<compile_context>
chip_gen: v6e
topology: v6e:2x2x1
jax: 0.10.0
libtpu: 0.0.40
codegen_flags: <defaults>
</compile_context>

<pallas_src>
import jax
import jax.numpy as jnp
from jax import lax
from jax.experimental import pallas as pl
from jax.experimental.pallas import tpu as pltpu


def _round_up(n, m):
    return ((n + m - 1) // m) * m


def mlp_kernel_out1(x_ref, w1_ref, b1_ref, w2_ref, b2_ref, o_ref):
    """fc1 -> ReLU -> fc2 (out_dim == 1) -> tanh, computed feature-major.

    x_ref:  (tb, in)      batch tile (f32 or bf16)
    w1_ref: (hidden, in)  bf16, VMEM-resident (PyTorch layout)
    b1_ref: (hidden, 1)   f32
    w2_ref: (hidden, 1)   f32
    b2_ref: (1, 1)        f32
    o_ref:  (1, tb)       lane-dense output tile (batch on lanes)
    """
    x = x_ref[...].astype(jnp.bfloat16)                      # no-op if x already bf16
    # h^T = w1 @ x^T: contract the minor dims of both operands (q@k^T pattern).
    # Result (hidden, tb) puts batch on lanes so everything downstream runs on
    # full vregs and the final store is unmasked.
    ht = lax.dot_general(w1_ref[...], x, (((1,), (1,)), ((), ())),
                         preferred_element_type=jnp.float32)  # (hidden, tb) f32
    ht = jnp.maximum(ht + b1_ref[...], 0.0)                   # bias + ReLU in f32
    # fc2 with out_dim == 1: weighted reduction over hidden (sublane axis, XLU).
    y = jnp.sum(ht * w2_ref[...], axis=0, keepdims=True) + b2_ref[...]   # (1, tb)
    o_ref[...] = jnp.tanh(y).astype(o_ref.dtype)


def mlp_kernel_general(x_ref, w1t_ref, b1_ref, w2t_ref, b2_ref, o_ref):
    """Same forward pass for arbitrary out_dim (both matmuls on the MXU).

    Weights are pre-transposed once in the wrapper (w1t: (in, hidden),
    w2t: (hidden, out)) so both contractions use dim 1 of the activations
    against dim 0 of the resident weight.
    """
    x = x_ref[...].astype(jnp.bfloat16)                                   # (tb, in)
    h = jnp.dot(x, w1t_ref[...], preferred_element_type=jnp.float32)      # (tb, hidden)
    h = jnp.maximum(h + b1_ref[...], 0.0)
    y = jnp.dot(h.astype(jnp.bfloat16), w2t_ref[...],
                preferred_element_type=jnp.float32) + b2_ref[...]         # (tb, out)
    o_ref[...] = jnp.tanh(y).astype(o_ref.dtype)


def _choose_batch_tile(B, block_b):
    """Pick the batch tile.

    - Small batches: one full-extent block (block == array dim satisfies the
      (8,128) rule regardless of alignment).
    - Large batches: a multiple of 128 (so the (1, tb) output block is
      lane-dense) and at least 2 grid steps so the "parallel" batch axis can
      feed both TensorCores on dual-TC parts (v7x).
    """
    if B <= 128:
        return B
    tb = min(block_b, max(128, _round_up(pl.cdiv(B, 2), 128)))
    return B if tb >= B else tb


def _vmem_limit_bytes(tb, in_dim, hidden_dim, out_dim, x_itemsize):
    """Rough per-step VMEM need with headroom, clamped to stay legal on v7x."""
    h_rows = _round_up(hidden_dim, 8)
    per_step = (2 * tb * in_dim * x_itemsize            # x block, double-buffered
                + 2 * tb * max(out_dim, 1) * x_itemsize  # out block, double-buffered
                + tb * in_dim * 2                        # in-kernel bf16 copy of x
                + 3 * tb * h_rows * 4)                   # h / ReLU / fc2 f32 temporaries
    return int(min(max(2 * per_step, 16 << 20), 60 << 20))


def regression_mlp(x, w1, b1, w2, b2, *, block_b=8192):
    """Forward pass of RegressionMLP.

    x:  (B, in_dim), f32 or bf16 (bf16 halves HBM read traffic if the producer
        can emit it; the in-kernel cast is then a no-op).
    w1: (hidden, in_dim), b1: (hidden,)    -- PyTorch nn.Linear layout
    w2: (out_dim, hidden), b2: (out_dim,)

    block_b: batch rows per grid step.  Default 8192 (~1 MiB of f32 x / step)
    is safe on every generation; raise to 16384-32768 on v6e/v5e, keep
    <= 16384 on v7x.
    """
    B, in_dim = x.shape
    hidden_dim = w1.shape[0]
    out_dim = w2.shape[0]

    tb = _choose_batch_tile(B, block_b)
    grid = (pl.cdiv(B, tb),)
    resident = lambda i: (0, 0)   # weights/biases stay in VMEM across the whole grid

    cost = pl.CostEstimate(
        flops=2 * B * (in_dim * hidden_dim + hidden_dim * out_dim),
        transcendentals=B * out_dim,
        bytes_accessed=(x.size * x.dtype.itemsize
                        + (w1.size + w2.size) * 2
                        + (b1.size + b2.size) * 4
                        + B * out_dim * x.dtype.itemsize),
    )
    compiler_params = pltpu.CompilerParams(
        dimension_semantics=("parallel",),
        vmem_limit_bytes=_vmem_limit_bytes(tb, in_dim, hidden_dim, out_dim,
                                           x.dtype.itemsize),
    )

    if out_dim == 1:
        # Lane-dense output path: compute feature-major, emit a (1, B) result,
        # reshape to (B, 1) in the wrapper (pure reshape, no transpose).
        w1_p = w1.astype(jnp.bfloat16)                        # (hidden, in)
        b1_p = b1.reshape(hidden_dim, 1).astype(jnp.float32)
        w2_p = w2.reshape(hidden_dim, 1).astype(jnp.float32)  # VPU/XLU reduce path
        b2_p = b2.reshape(1, 1).astype(jnp.float32)
        out = pl.pallas_call(
            mlp_kernel_out1,
            out_shape=jax.ShapeDtypeStruct((1, B), x.dtype),
            grid=grid,
            in_specs=[
                pl.BlockSpec((tb, in_dim), lambda i: (i, 0)),     # x: tiled over batch
                pl.BlockSpec((hidden_dim, in_dim), resident),     # w1: VMEM-resident
                pl.BlockSpec((hidden_dim, 1), resident),          # b1
                pl.BlockSpec((hidden_dim, 1), resident),          # w2
                pl.BlockSpec((1, 1), resident),                   # b2
            ],
            out_specs=pl.BlockSpec((1, tb), lambda i: (0, i)),    # lane-dense output
            compiler_params=compiler_params,
            cost_estimate=cost,
        )(x, w1_p, b1_p, w2_p, b2_p)
        return out.reshape(B, 1)

    # General out_dim: both matmuls on the MXU; weights pre-transposed once.
    w1_p = jnp.transpose(w1).astype(jnp.bfloat16)             # (in, hidden)
    b1_p = b1.reshape(1, hidden_dim).astype(jnp.float32)
    w2_p = jnp.transpose(w2).astype(jnp.bfloat16)             # (hidden, out)
    b2_p = b2.reshape(1, out_dim).astype(jnp.float32)
    return pl.pallas_call(
        mlp_kernel_general,
        out_shape=jax.ShapeDtypeStruct((B, out_dim), x.dtype),
        grid=grid,
        in_specs=[
            pl.BlockSpec((tb, in_dim), lambda i: (i, 0)),
            pl.BlockSpec((in_dim, hidden_dim), resident),
            pl.BlockSpec((1, hidden_dim), resident),
            pl.BlockSpec((hidden_dim, out_dim), resident),
            pl.BlockSpec((1, out_dim), resident),
        ],
        out_specs=pl.BlockSpec((tb, out_dim), lambda i: (i, 0)),
        compiler_params=compiler_params,
        cost_estimate=cost,
    )(x, w1_p, b1_p, w2_p, b2_p)


def _torch_like_linear_init(key, out_dim, in_dim):
    """Deterministic init matching nn.Linear's U(-1/sqrt(in), 1/sqrt(in))."""
    kw, kb = jax.random.split(key)
    bound = 1.0 / jnp.sqrt(jnp.float32(in_dim))
    w = jax.random.uniform(kw, (out_dim, in_dim), jnp.float32, -bound, bound)
    b = jax.random.uniform(kb, (out_dim,), jnp.float32, -bound, bound)
    return w, b


def _reference(x, w1, b1, w2, b2):
    return jnp.tanh(jnp.maximum(x @ w1.T + b1, 0.0) @ w2.T + b2)


if __name__ == "__main__":
    key = jax.random.PRNGKey(0)
    k_x, k_fc1, k_fc2, k_x2, k_fc2b = jax.random.split(key, 5)

    # Small shapes consistent with the module: in_dim=32, hidden_dim=50, out_dim=1.
    B, in_dim, hidden_dim, out_dim = 8, 32, 50, 1
    x = jax.random.normal(k_x, (B, in_dim), jnp.float32)
    w1, b1 = _torch_like_linear_init(k_fc1, hidden_dim, in_dim)
    w2, b2 = _torch_like_linear_init(k_fc2, out_dim, hidden_dim)

    # Main path (out_dim == 1, lane-dense output).
    out = jax.block_until_ready(regression_mlp(x, w1, b1, w2, b2))
    ref = _reference(x, w1, b1, w2, b2)
    assert out.shape == (B, out_dim)
    assert bool(jnp.all(jnp.isfinite(out)))
    # Tolerance loosened because the fc1 matmul runs in bf16 (f32 accumulate).
    assert jnp.allclose(out, ref, atol=2e-2, rtol=2e-2)

    # Multi-step grid (>= 2 steps + partial edge block) on the lane-dense path.
    B2 = 300
    x2 = jax.random.normal(k_x2, (B2, in_dim), jnp.float32)
    out2 = jax.block_until_ready(regression_mlp(x2, w1, b1, w2, b2, block_b=256))
    ref2 = _reference(x2, w1, b1, w2, b2)
    assert out2.shape == (B2, 1)
    assert bool(jnp.all(jnp.isfinite(out2)))
    assert jnp.allclose(out2, ref2, atol=2e-2, rtol=2e-2)

    # General out_dim path (both matmuls on the MXU, pre-transposed weights).
    w2g, b2g = _torch_like_linear_init(k_fc2b, 4, hidden_dim)
    out3 = jax.block_until_ready(regression_mlp(x, w1, b1, w2g, b2g))
    ref3 = _reference(x, w1, b1, w2g, b2g)
    assert out3.shape == (B, 4)
    assert bool(jnp.all(jnp.isfinite(out3)))
    assert jnp.allclose(out3, ref3, atol=2e-2, rtol=2e-2)

    print("KERNEL_OK")
</pallas_src>

<mosaic_0001>
module attributes {stable_mosaic.version = 11 : i64} {
  func.func @mlp_kernel_out1(%arg0: i32, %arg1: memref<8x32xf32, #tpu.memory_space<vmem>>, %arg2: memref<50x32xbf16, #tpu.memory_space<vmem>>, %arg3: memref<50x1xf32, #tpu.memory_space<vmem>>, %arg4: memref<50x1xf32, #tpu.memory_space<vmem>>, %arg5: memref<1x1xf32, #tpu.memory_space<vmem>>, %arg6: memref<1x8xf32, #tpu.memory_space<vmem>>) attributes {dimension_semantics = [#tpu.dimension_semantics<parallel>], iteration_bounds = array<i64: 1>, scalar_prefetch = 0 : i64, scratch_operands = 0 : i64, tpu.core_type = #tpu.core_type<tc>, window_params = [{transform_indices = @transform_0, window_bounds = array<i64: 8, 32>}, {pipeline_mode = #tpu.pipeline_mode<synchronous>, transform_indices = @transform_1, window_bounds = array<i64: 50, 32>}, {pipeline_mode = #tpu.pipeline_mode<synchronous>, transform_indices = @transform_2, window_bounds = array<i64: 50, 1>}, {pipeline_mode = #tpu.pipeline_mode<synchronous>, transform_indices = @transform_3, window_bounds = array<i64: 50, 1>}, {pipeline_mode = #tpu.pipeline_mode<synchronous>, transform_indices = @transform_4, window_bounds = array<i64: 1, 1>}, {transform_indices = @transform_5, window_bounds = array<i64: 1, 8>}]} {
    %c0 = arith.constant 0 : index
    %c0_0 = arith.constant 0 : index
    %0 = vector.load %arg1[%c0, %c0_0] : memref<8x32xf32, #tpu.memory_space<vmem>>, vector<8x32xf32>
    %1 = arith.truncf %0 : vector<8x32xf32> to vector<8x32xbf16>
    %c0_1 = arith.constant 0 : index
    %c0_2 = arith.constant 0 : index
    %2 = vector.load %arg2[%c0_1, %c0_2] : memref<50x32xbf16, #tpu.memory_space<vmem>>, vector<50x32xbf16>
    %cst = arith.constant dense<0.000000e+00> : vector<50x8xf32>
    %3 = tpu.matmul %2, %1, %cst {dimension_numbers = #tpu.dot_dimension_numbers<[1], [1], [0], [0], [0, 0, 1, 0], [], []>} : vector<50x32xbf16>, vector<8x32xbf16>, vector<50x8xf32> -> vector<50x8xf32>
    %c0_3 = arith.constant 0 : index
    %c0_4 = arith.constant 0 : index
    %4 = vector.load %arg3[%c0_3, %c0_4] : memref<50x1xf32, #tpu.memory_space<vmem>>, vector<50x1xf32>
    %5 = vector.broadcast %4 : vector<50x1xf32> to vector<50x8xf32>
    %6 = arith.addf %3, %5 : vector<50x8xf32>
    %cst_5 = arith.constant 0.000000e+00 : f32
    %7 = vector.broadcast %cst_5 : f32 to vector<50x8xf32>
    %8 = arith.maximumf %6, %7 : vector<50x8xf32>
    %c0_6 = arith.constant 0 : index
    %c0_7 = arith.constant 0 : index
    %9 = vector.load %arg4[%c0_6, %c0_7] : memref<50x1xf32, #tpu.memory_space<vmem>>, vector<50x1xf32>
    %10 = vector.broadcast %9 : vector<50x1xf32> to vector<50x8xf32>
    %11 = arith.mulf %8, %10 : vector<50x8xf32>
    %cst_8 = arith.constant dense<0.000000e+00> : vector<8xf32>
    %12 = vector.multi_reduction <add>, %11, %cst_8 [0] : vector<50x8xf32> to vector<8xf32>
    %13 = vector.shape_cast %12 : vector<8xf32> to vector<1x8xf32>
    %c0_9 = arith.constant 0 : index
    %c0_10 = arith.constant 0 : index
    %14 = vector.load %arg5[%c0_9, %c0_10] : memref<1x1xf32, #tpu.memory_space<vmem>>, vector<1x1xf32>
    %15 = vector.broadcast %14 : vector<1x1xf32> to vector<1x8xf32>
    %16 = arith.addf %13, %15 : vector<1x8xf32>
    %17 = math.tanh %16 : vector<1x8xf32>
    %c0_11 = arith.constant 0 : index
    %c0_12 = arith.constant 0 : index
    %18 = vector.load %arg6[%c0_11, %c0_12] : memref<1x8xf32, #tpu.memory_space<vmem>>, vector<1x8xf32>
    tpu.vector_store %arg6[%c0_11, %c0_12], %17 {strides = array<i32>} : memref<1x8xf32, #tpu.memory_space<vmem>>, vector<1x8xf32>,
    return
  }
  func.func @transform_0(%arg0: i32) -> (i32, i32) {
    %c0_i32 = arith.constant 0 : i32
    %c0_i32_0 = arith.constant 0 : i32
    return %arg0, %c0_i32 : i32, i32
  }
  func.func @transform_1(%arg0: i32) -> (i32, i32) {
    %c0_i32 = arith.constant 0 : i32
    %c0_i32_0 = arith.constant 0 : i32
    %c0_i32_1 = arith.constant 0 : i32
    return %c0_i32, %c0_i32_0 : i32, i32
  }
  func.func @transform_2(%arg0: i32) -> (i32, i32) {
    %c0_i32 = arith.constant 0 : i32
    %c0_i32_0 = arith.constant 0 : i32
    %c0_i32_1 = arith.constant 0 : i32
    return %c0_i32, %c0_i32_0 : i32, i32
  }
  func.func @transform_3(%arg0: i32) -> (i32, i32) {
    %c0_i32 = arith.constant 0 : i32
    %c0_i32_0 = arith.constant 0 : i32
    %c0_i32_1 = arith.constant 0 : i32
    return %c0_i32, %c0_i32_0 : i32, i32
  }
  func.func @transform_4(%arg0: i32) -> (i32, i32) {
    %c0_i32 = arith.constant 0 : i32
    %c0_i32_0 = arith.constant 0 : i32
    %c0_i32_1 = arith.constant 0 : i32
    return %c0_i32, %c0_i32_0 : i32, i32
  }
  func.func @transform_5(%arg0: i32) -> (i32, i32) {
    %c0_i32 = arith.constant 0 : i32
    %c0_i32_0 = arith.constant 0 : i32
    return %c0_i32, %arg0 : i32, i32
  }
}

</mosaic_0001>

<llo_original>
// kernel: tpu_custom_call.1
$region0: #{tpu_custom_call.1}
  #allocation0 [shape = 'u32[]', space=smem, size = 0x4, offset = 0x4, fixed_abs, tag = 'smem constant byte address 0x4 - core index']
  #allocation1 [shape = 'u32[144,128]{1,0:T(1,128)}', space=vmem, size = 0x12000, scoped, tag = 'internal scratch']
  #allocation2 [shape = 'f32[1,1]{1,0:T(1,128)S(1)}', space=vmem, size = 0x200, scoped, tag = 'scoped memory for tpu_custom_call.1']
  %s0 = inlined_call_operand.vmem [shape: f32[8,32], index: 0, kind: input, shape index: {}]
  %s1 = inlined_call_operand.vmem [shape: bf16[50,32], index: 1, kind: input, shape index: {}]
  %s2 = inlined_call_operand.vmem [shape: f32[50,1], index: 2, kind: input, shape index: {}]
  %s3 = inlined_call_operand.vmem [shape: f32[50,1], index: 3, kind: input, shape index: {}]
  %s4 = inlined_call_operand.<no memory space> [shape: f32[1,1], index: 4, kind: input, shape index: {}]
  %s5 = inlined_call_operand.hbm [shape: f32[1,8], index: 5, kind: output, shape index: {}]
  %s6 = sld [smem:[#allocation0]]
  $region30: #{tpu_custom_call.1} parent=0
    _
  %s8 = ssub.s32 1, %s6
  %s9 = scalar_select 0, %s8, %s6
  %v10 = vstv %s4
  %11 = vst [vmem:[#allocation2] sm:$0x1] %v10
  $region1: #{tpu_custom_call.1} parent=0
    #allocation3 [shape = 'u8[512]{0}', space=vmem, size = 0x400, scoped, tag = 'output window, operand 0, single buffered']
    #allocation4 [shape = 's32[1]{0}', space=sflag, size = 0x4, scoped, tag = 'scoped memory for tpu_custom_call.1']
    %12 = vsyncpa [#allocation4], 0
    // Predicated region
    $region2: #{tpu_custom_call.1} parent=1 // pred_check
      _
    $region3: #{tpu_custom_call.1} parent=1 // pred_check_branch
      %14 = sbr.rel (0) target = $region5
    $region4: #{tpu_custom_call.1} parent=1 // pred_region
      _
    $region5: #{tpu_custom_call.1} parent=1 // pred_fallthru
      _
    // Predicated region
    $region6: #{tpu_custom_call.1} parent=1 // pred_check
      _
    $region7: #{tpu_custom_call.1} parent=1 // pred_check_branch
      %16 = sbr.rel (0) target = $region9
    $region8: #{tpu_custom_call.1} parent=1 // pred_region
      _
    $region9: #{tpu_custom_call.1} parent=1 // pred_fallthru
      _
    // Predicated region
    $region10: #{tpu_custom_call.1} parent=1 // pred_check
      _
    $region11: #{tpu_custom_call.1} parent=1 // pred_check_branch
      %18 = sbr.rel (0) target = $region13
    $region12: #{tpu_custom_call.1} parent=1 // pred_region
      _
    $region13: #{tpu_custom_call.1} parent=1 // pred_fallthru
      _
    // Predicated region
    $region14: #{tpu_custom_call.1} parent=1 // pred_check
      _
    $region15: #{tpu_custom_call.1} parent=1 // pred_check_branch
      %20 = sbr.rel (0) target = $region17
    $region16: #{tpu_custom_call.1} parent=1 // pred_region
      _
    $region17: #{tpu_custom_call.1} parent=1 // pred_fallthru
      _
    // Predicated region
    $region18: #{tpu_custom_call.1} parent=1 // pred_check
      _
    $region19: #{tpu_custom_call.1} parent=1 // pred_check_branch
      %22 = sbr.rel (0) target = $region21
    $region20: #{tpu_custom_call.1} parent=1 // pred_region
      _
    $region21: #{tpu_custom_call.1} parent=1 // pred_fallthru
      _
    %v24 = vld [vmem:[%s0] sm:$0xff]
    %v25 = vpack.c.bf16 %v24, %v24
    %v26 = vld [vmem:[%s1] sm:$0xf]
    %v27 = vld [vmem:[%s1 + $0x4] sm:$0xf]
    %v28 = vld [vmem:[%s1 + $0x8] sm:$0xf]
    %v29 = vld [vmem:[%s1 + $0xc] sm:$0xf]
    %v30 = vld [vmem:[%s1 + $0x10] sm:$0xf]
    %v31 = vld [vmem:[%s1 + $0x14] sm:$0xf]
    %v32 = vld [vmem:[%s1 + $0x18] sm:$0x1]
    %v33 = vld [vmem:[%s2] sm:$0xff]
    %v34 = vld [vmem:[%s2 + $0x8] sm:$0xff]
    %v35 = vld [vmem:[%s2 + $0x10] sm:$0xff]
    %v36 = vld [vmem:[%s2 + $0x18] sm:$0xff]
    %v37 = vld [vmem:[%s2 + $0x20] sm:$0xff]
    %v38 = vld [vmem:[%s2 + $0x28] sm:$0xff]
    %v39 = vld [vmem:[%s2 + $0x30] sm:$0x3]
    %41 = vset.pattern.permute.xlu0 0
    %42 = vperm.xlu0 %41, %v33
    %v43 = vpop.permute.xlu0 %42
    %46 = vset.pattern.permute.xlu0 0
    %47 = vperm.xlu0 %46, %v34
    %v48 = vpop.permute.xlu0 %47
    %51 = vset.pattern.permute.xlu0 0
    %52 = vperm.xlu0 %51, %v35
    %v53 = vpop.permute.xlu0 %52
    %56 = vset.pattern.permute.xlu0 0
    %57 = vperm.xlu0 %56, %v36
    %v58 = vpop.permute.xlu0 %57
    %61 = vset.pattern.permute.xlu0 0
    %62 = vperm.xlu0 %61, %v37
    %v63 = vpop.permute.xlu0 %62
    %66 = vset.pattern.permute.xlu0 0
    %67 = vperm.xlu0 %66, %v38
    %v68 = vpop.permute.xlu0 %67
    %71 = vset.pattern.permute.xlu0 0
    %72 = vperm.xlu0 %71, %v39
    %v73 = vpop.permute.xlu0 %72
    %v82 = vunpack.c.l.b16 %v26
    %v83 = vunpack.c.l.b16 %v27
    %v84 = vunpack.c.l.b16 %v28
    %v85 = vunpack.c.l.b16 %v29
    %v86 = vunpack.c.l.b16 %v30
    %v87 = vunpack.c.l.b16 %v31
    %v88 = vunpack.c.l.b16 %v32
    %v89 = vpack.c.b16 %v83, %v82
    %v90 = vpack.c.b16 %v85, %v84
    %v91 = vpack.c.b16 %v87, %v86
    %v92 = vpack.c.b16 %v88, %v88
    %vm93 = vcmask 261120
    %v95 = vsel %vm93, %v89, 0
    %v98 = vsel %vm93, %v90, 0
    %v101 = vsel %vm93, %v91, 0
    %v104 = vsel %vm93, %v92, 0
    %v107 = vsel %vm93, %v25, 0
    %109 = vmatprep.subr.bf16.mxu0 0
    %110 = vmatpush1.bf16.xpose.msra.mxu0 0
    %111 = vmatprep.subr.bf16.mxu0 0
    %112 = vmatpush1.bf16.xpose.msra.mxu0 0
    %113 = vmatprep.subr.bf16.mxu0 0
    %114 = vmatpush1.bf16.xpose.msra.mxu0 0
    %115 = vmatprep.subr.bf16.mxu0 0
    %116 = vmatpush1.bf16.xpose.msra.mxu0 0
    %117 = vmatprep.subr.bf16.mxu0 0
    %118 = vmatpush1.bf16.xpose.msra.mxu0 0
    %119 = vmatprep.subr.bf16.mxu0 0
    %120 = vmatpush1.bf16.xpose.msra.mxu0 0
    %121 = vmatprep.subr.bf16.mxu0 0
    %122 = vmatpush1.bf16.xpose.msra.mxu0 0
    %123 = vmatprep.subr.bf16.mxu0 0
    %124 = vmatpush1.bf16.xpose.msra.mxu0 %v107
    %125 = vmatprep.subr.bf16.mxu0 0
    %126 = vmatpush2.bf16.xpose.msra.mxu0 0
    %127 = vmatprep.subr.bf16.mxu0 0
    %128 = vmatpush2.bf16.xpose.msra.mxu0 0
    %129 = vmatprep.subr.bf16.mxu0 0
    %130 = vmatpush2.bf16.xpose.msra.mxu0 0
    %131 = vmatprep.subr.bf16.mxu0 0
    %132 = vmatpush2.bf16.xpose.msra.mxu0 0
    %133 = vmatprep.subr.bf16.mxu0 0
    %134 = vmatpush2.bf16.xpose.msra.mxu0 0
    %135 = vmatprep.subr.bf16.mxu0 0
    %136 = vmatpush2.bf16.xpose.msra.mxu0 0
    %137 = vmatprep.subr.bf16.mxu0 0
    %138 = vmatpush2.bf16.xpose.msra.mxu0 0
    %139 = vmatprep.subr.bf16.mxu0 0
    %140 = vmatpush2.bf16.xpose.msra.mxu0 0
    %141 = vmatprep.mubr.bf16.mxu0 0
    %142 = vmatmul.mubr.bf16.gmra.mxu0 %v95
    %v143 = vpop.f32.mrf.mxu0
    %v144 = vadd.f32 %v43, %v143
    %v145 = vpop.f32.mrf.mxu0
    %v146 = vpop.f32.mrf.mxu0
    %v147 = vadd.f32 %v48, %v146
    %v148 = vpop.f32.mrf.mxu0
    %149 = vmatprep.mubr.bf16.mxu0 0
    %150 = vmatmul.mubr.bf16.gmra.mxu0 %v98
    %v151 = vpop.f32.mrf.mxu0
    %v152 = vadd.f32 %v53, %v151
    %v153 = vpop.f32.mrf.mxu0
    %v154 = vpop.f32.mrf.mxu0
    %v155 = vadd.f32 %v58, %v154
    %v156 = vpop.f32.mrf.mxu0
    %157 = vmatprep.mubr.bf16.mxu0 0
    %158 = vmatmul.mubr.bf16.gmra.mxu0 %v101
    %v159 = vpop.f32.mrf.mxu0
    %v160 = vadd.f32 %v63, %v159
    %v161 = vpop.f32.mrf.mxu0
    %v162 = vpop.f32.mrf.mxu0
    %v163 = vadd.f32 %v68, %v162
    %v164 = vpop.f32.mrf.mxu0
    %165 = vmatprep.mubr.bf16.mxu0 0
    %166 = vmatmul.mubr.bf16.gmra.mxu0 %v104
    %v167 = vpop.f32.mrf.mxu0
    %v168 = vadd.f32 %v73, %v167
    %v169 = vpop.f32.mrf.mxu0
    %v170 = vpop.f32.mrf.mxu0
    %v171 = vpop.f32.mrf.mxu0
    %172 = vdwg.mxu0
    %v173 = vmax.f32 %v144, 0.0
    %v174 = vmax.f32 %v147, 0.0
    %v175 = vmax.f32 %v152, 0.0
    %v176 = vmax.f32 %v155, 0.0
    %v177 = vmax.f32 %v160, 0.0
    %v178 = vmax.f32 %v163, 0.0
    %v179 = vmax.f32 %v168, 0.0
    %v180 = vld [vmem:[%s3] sm:$0xff]
    %v181 = vld [vmem:[%s3 + $0x8] sm:$0xff]
    %v182 = vld [vmem:[%s3 + $0x10] sm:$0xff]
    %v183 = vld [vmem:[%s3 + $0x18] sm:$0xff]
    %v184 = vld [vmem:[%s3 + $0x20] sm:$0xff]
    %v185 = vld [vmem:[%s3 + $0x28] sm:$0xff]
    %v186 = vld [vmem:[%s3 + $0x30] sm:$0x3]
    %188 = vset.pattern.permute.xlu0 0
    %189 = vperm.xlu0 %188, %v180
    %v190 = vpop.permute.xlu0 %189
    %193 = vset.pattern.permute.xlu0 0
    %194 = vperm.xlu0 %193, %v181
    %v195 = vpop.permute.xlu0 %194
    %198 = vset.pattern.permute.xlu0 0
    %199 = vperm.xlu0 %198, %v182
    %v200 = vpop.permute.xlu0 %199
    %203 = vset.pattern.permute.xlu0 0
    %204 = vperm.xlu0 %203, %v183
    %v205 = vpop.permute.xlu0 %204
    %208 = vset.pattern.permute.xlu0 0
    %209 = vperm.xlu0 %208, %v184
    %v210 = vpop.permute.xlu0 %209
    %213 = vset.pattern.permute.xlu0 0
    %214 = vperm.xlu0 %213, %v185
    %v215 = vpop.permute.xlu0 %214
    %218 = vset.pattern.permute.xlu0 0
    %219 = vperm.xlu0 %218, %v186
    %v220 = vpop.permute.xlu0 %219
    %v222 = vmul.f32 %v173, %v190
    %v223 = vmul.f32 %v174, %v195
    %v224 = vmul.f32 %v175, %v200
    %v225 = vmul.f32 %v176, %v205
    %v226 = vmul.f32 %v177, %v210
    %v227 = vmul.f32 %v178, %v215
    %v228 = vmul.f32 %v179, %v220
    %vm229 = vcmask 64512
    %v230 = vsel %vm229, %v222, 0.0
    %v231 = vsel %vm229, %v223, 0.0
    %v232 = vadd.f32 %v230, %v231
    %v233 = vsel %vm229, %v224, 0.0
    %v234 = vadd.f32 %v232, %v233
    %v235 = vsel %vm229, %v225, 0.0
    %v236 = vadd.f32 %v234, %v235
    %v237 = vsel %vm229, %v226, 0.0
    %v238 = vadd.f32 %v236, %v237
    %v239 = vsel %vm229, %v227, 0.0
    %v240 = vadd.f32 %v238, %v239
    %vm241 = vcmask 58368
    %v242 = vsel %vm241, %v228, 0.0
    %v243 = vadd.f32 %v240, %v242
    %v244 = vrot.slane %v243, 4
    %v245 = vadd.f32 %v243, %v244
    %v246 = vrot.slane %v245, 2
    %v247 = vadd.f32 %v245, %v246
    %v248 = vrot.slane %v247, 1
    %v249 = vadd.f32 %v247, %v248
    %v250 = vld [vmem:[#allocation2] sm:$0x1]
    %252 = vset.pattern.permute.xlu0 0
    %253 = vperm.xlu0 %252, %v250
    %v254 = vpop.permute.xlu0 %253
    %v256 = vlaneseq
    %v257 = vshrl.u32 %v256, 7
    %v258 = vsub.s32 0, %v257
    %v259 = vrot.slane %v254, %v258
    %v260 = vadd.f32 %v249, %v259
    %v261 = vtanh.pop %v260
    %vm262 = vcmask 57344
    %263 = vst.msk [vmem:[#allocation3] sm:$0x1] %vm262, %v261
    // Predicated region
    $region22: #{tpu_custom_call.1} parent=1 // pred_check
      _
    $region23: #{tpu_custom_call.1} parent=1 // pred_check_branch
      %265 = sbr.rel (0) target = $region25
    $region24: #{tpu_custom_call.1} parent=1 // pred_region
      %s267 = ssub.s32 16, 16
      %268 = vsyncadd [#allocation4], %s267
      %s270 = sshll.u32 [#allocation3], 4
      %s271 = int_to_ptr.vmem [resolvable:$true] %s270
      %273 = dma.vmem_to_hbm [thread:$0]  %s271, 16, %s5, [#allocation4]
    $region25: #{tpu_custom_call.1} parent=1 // pred_fallthru
      _
    // Predicated region
    $region26: #{tpu_custom_call.1} parent=1 // pred_check
      _
    $region27: #{tpu_custom_call.1} parent=1 // pred_check_branch
      %275 = sbr.rel (0) target = $region29
    $region28: #{tpu_custom_call.1} parent=1 // pred_region
      %276 = dma.done [#allocation4], 16
    $region29: #{tpu_custom_call.1} parent=1 // pred_fallthru
      _
    %277 = vsyncpa [#allocation4], 1

</llo_original>
